<compile_context>
chip_gen: v5e
topology: v5e:2x2
jax: 0.10.0
libtpu: 0.0.40
codegen_flags: <defaults>
</compile_context>

<pallas_src>
import jax
import jax.numpy as jnp
from jax import lax
from jax.experimental import pallas as pl
from jax.experimental.pallas import tpu as pltpu


def _banded_conv_weights(w_oihw, W, dtype):
    """(Cout, Cin, 3, 3) OIHW -> (3, W*Cin, W*Cout) x-major banded tap matrices.

    Band_ky[xi*Cin + ci, xo*Cout + co] = w[co, ci, ky, xi - xo + 1]
    for xi - xo in {-1, 0, 1}, else 0.  Width zero-padding is absorbed by
    omitting out-of-range taps, so K = W*Cin (no padded columns).
    """
    Cout, Cin, KH, KW = w_oihw.shape
    assert KH == 3 and KW == 3, "only 3x3 kernels supported"
    bands = []
    for ky in range(3):
        acc = jnp.zeros((W * Cin, W * Cout), jnp.float32)
        for kx in range(3):
            # shift[xi, xo] = 1 iff xi == xo + kx - 1
            shift = jnp.eye(W, k=1 - kx, dtype=jnp.float32)
            acc = acc + jnp.kron(shift, w_oihw[:, :, ky, kx].T.astype(jnp.float32))
        bands.append(acc)
    # TODO(synk): for large W the per-band footprint is O(W^2 * Cin * Cout);
    # tile W (one band slab per ~128-256 output columns, matmul N a multiple of
    # 256 for the v6e/v7x MXU) before production shapes, or the weights alone
    # exceed v7x's 64 MiB VMEM.
    return jnp.stack(bands).astype(dtype)


def _shortcut_kernel(x_ref, w1_ref, b1_ref, w2_ref, b2_ref, o_ref,
                     xpad_ref, hpad_ref):
    # x_ref / o_ref : (Nb, H, W*C)      x-major rows, Nb images per grid step
    # w1_ref        : (3, W*C,  W*Cm)   banded conv1 weights (MXU dtype)
    # b1_ref        : (1, W*Cm)         f32 bias, tiled per x position
    # w2_ref        : (3, W*Cm, W*C)    banded conv2 weights (MXU dtype)
    # b2_ref        : (1, W*C)          f32
    # xpad_ref      : VMEM (Nb*(H+1)+2, W*C)   MXU-dtype stacked padded input
    # hpad_ref      : VMEM (Nb*(H+1)+2, W*Cm)  MXU-dtype stacked padded hidden
    Nb, H, K1 = x_ref.shape
    N1 = w1_ref.shape[2]
    N2 = w2_ref.shape[2]
    Hs = H + 1                  # per-image stride: H data rows + 1 shared halo row
    Mtot = Nb * Hs

    # Re-zero only the halo rows each step (data rows are fully overwritten
    # below); correct on every generation regardless of how a "parallel" grid
    # axis is sharded across TensorCores.
    for b in range(Nb):
        xpad_ref[b * Hs:b * Hs + 1, :] = jnp.zeros((1, K1), xpad_ref.dtype)
        hpad_ref[b * Hs:b * Hs + 1, :] = jnp.zeros((1, N1), hpad_ref.dtype)
    xpad_ref[Mtot:Mtot + 2, :] = jnp.zeros((2, K1), xpad_ref.dtype)
    hpad_ref[Mtot:Mtot + 2, :] = jnp.zeros((2, N1), hpad_ref.dtype)

    # Stage: one contiguous lane-dense slab per image, cast to MXU dtype once.
    for b in range(Nb):
        xpad_ref[1 + b * Hs:1 + b * Hs + H, :] = x_ref[b].astype(xpad_ref.dtype)

    # conv1 + bias + ReLU: 3 banded MXU matmuls over the stacked rows
    # (M = Nb*(H+1); the last row of each image block is junk and is skipped).
    acc1 = jnp.zeros((Mtot, N1), jnp.float32)
    for ky in range(3):
        acc1 = acc1 + jnp.dot(xpad_ref[ky:ky + Mtot, :], w1_ref[ky],
                              preferred_element_type=jnp.float32)
    h1 = jnp.maximum(acc1 + b1_ref[...], 0.0)

    # Restage the ReLU output (skipping junk rows keeps hpad's halo rows zero).
    for b in range(Nb):
        hpad_ref[1 + b * Hs:1 + b * Hs + H, :] = (
            h1[b * Hs:b * Hs + H, :].astype(hpad_ref.dtype))

    # conv2: 3 banded MXU matmuls (bias added at destage, only on useful rows).
    acc2 = jnp.zeros((Mtot, N2), jnp.float32)
    for ky in range(3):
        acc2 = acc2 + jnp.dot(hpad_ref[ky:ky + Mtot, :], w2_ref[ky],
                              preferred_element_type=jnp.float32)

    # Residual shortcut + lane-dense store (one slab per image).
    for b in range(Nb):
        o_ref[b] = (x_ref[b].astype(jnp.float32)
                    + acc2[b * Hs:b * Hs + H, :]
                    + b2_ref[...]).astype(o_ref.dtype)


def _pick_batch_fold(N, H):
    """Images folded per grid step: push matmul M (= Nb*(H+1)) toward ~128 rows
    while keeping >= 2 grid steps when N allows (v7x 'parallel'-axis sharding
    over its two TensorCores)."""
    target = max(1, 128 // (H + 1))
    best = 1
    for nb in range(1, N + 1):
        if N % nb == 0 and nb <= target and N // nb >= min(N, 2):
            best = nb
    return best


def shortcut_block_forward(x_nchw, w1, b1, w2, b2, *,
                           mxu_dtype=jnp.bfloat16, batch_fold=None):
    """out = x + conv2(relu(conv1(x))); x NCHW, weights OIHW (PyTorch layout)."""
    N, C, H, W = x_nchw.shape
    Cm = w1.shape[0]
    nb = _pick_batch_fold(N, H) if batch_fold is None else batch_fold
    assert N % nb == 0

    # Weight / bias prep (tiny, traced once under jit), x-major band layout.
    w1b = _banded_conv_weights(w1, W, mxu_dtype)             # (3, W*C,  W*Cm)
    w2b = _banded_conv_weights(w2, W, mxu_dtype)             # (3, W*Cm, W*C)
    b1r = jnp.tile(b1.astype(jnp.float32), W)[None, :]       # (1, W*Cm)
    b2r = jnp.tile(b2.astype(jnp.float32), W)[None, :]       # (1, W*C)

    # One wrapper relayout NCHW -> x-major (N, H, W*C): every in-kernel staging
    # and output store becomes a contiguous lane-dense slab.
    x_xm = jnp.transpose(x_nchw, (0, 2, 3, 1)).reshape(N, H, W * C)

    Hs = H + 1
    rows = nb * Hs + 2

    # TODO(synk): for large H add an "arbitrary" H-tile grid axis (weights'
    # index_map kept constant so they stay VMEM-resident) with the 2-row halo
    # via pl.Element offsets or manual DMA; whole-image blocks are well within
    # the VMEM budget at these sizes (re-derive for v7x's 64 MiB when scaling).
    out_xm = pl.pallas_call(
        _shortcut_kernel,
        out_shape=jax.ShapeDtypeStruct((N, H, W * C), x_nchw.dtype),
        grid_spec=pltpu.PrefetchScalarGridSpec(
            num_scalar_prefetch=0,
            grid=(N // nb,),
            in_specs=[
                pl.BlockSpec((nb, H, W * C), lambda g: (g, 0, 0)),
                pl.BlockSpec((3, W * C, W * Cm), lambda g: (0, 0, 0)),
                pl.BlockSpec((1, W * Cm), lambda g: (0, 0)),
                pl.BlockSpec((3, W * Cm, W * C), lambda g: (0, 0, 0)),
                pl.BlockSpec((1, W * C), lambda g: (0, 0)),
            ],
            out_specs=pl.BlockSpec((nb, H, W * C), lambda g: (g, 0, 0)),
            scratch_shapes=[
                pltpu.VMEM((rows, W * C), mxu_dtype),
                pltpu.VMEM((rows, W * Cm), mxu_dtype),
            ],
        ),
        compiler_params=pltpu.CompilerParams(
            dimension_semantics=("parallel",),
            vmem_limit_bytes=32 * 1024 * 1024,
        ),
    )(x_xm, w1b, b1r, w2b, b2r)

    return jnp.transpose(out_xm.reshape(N, H, W, C), (0, 3, 1, 2))


def _reference(x_nchw, w1, b1, w2, b2):
    """Plain-JAX reference of x + conv2(relu(conv1(x))), NCHW / OIHW."""
    dn = lax.conv_dimension_numbers(x_nchw.shape, w1.shape,
                                    ("NCHW", "OIHW", "NCHW"))
    h = lax.conv_general_dilated(x_nchw, w1, (1, 1), ((1, 1), (1, 1)),
                                 dimension_numbers=dn)
    h = jnp.maximum(h + b1.reshape(1, -1, 1, 1), 0.0)
    y = lax.conv_general_dilated(h, w2, (1, 1), ((1, 1), (1, 1)),
                                 dimension_numbers=dn)
    return x_nchw + y + b2.reshape(1, -1, 1, 1)


if __name__ == "__main__":
    N, C, H, W = 4, 4, 16, 16
    Cm = 8  # hidden channels of the wrapped submodule

    key = jax.random.PRNGKey(0)
    kx_, k1, k2, k3, k4 = jax.random.split(key, 5)
    x = jax.random.normal(kx_, (N, C, H, W), dtype=jnp.float32)
    w1 = 0.1 * jax.random.normal(k1, (Cm, C, 3, 3), dtype=jnp.float32)
    b1 = 0.1 * jax.random.normal(k2, (Cm,), dtype=jnp.float32)
    w2 = 0.1 * jax.random.normal(k3, (C, Cm, 3, 3), dtype=jnp.float32)
    b2 = 0.1 * jax.random.normal(k4, (C,), dtype=jnp.float32)

    fwd = jax.jit(shortcut_block_forward,
                  static_argnames=("mxu_dtype", "batch_fold"))

    # Default path: bf16 MXU operands / scratch, f32 accumulation.
    out = jax.block_until_ready(fwd(x, w1, b1, w2, b2))
    # Exactness check of the kernel structure with f32 MXU operands.
    out_f32 = jax.block_until_ready(fwd(x, w1, b1, w2, b2,
                                        mxu_dtype=jnp.float32))

    ref = _reference(x, w1, b1, w2, b2)
    assert out.shape == (N, C, H, W)
    assert jnp.allclose(out_f32, ref, atol=2e-4, rtol=2e-4), \
        f"f32 max err {jnp.max(jnp.abs(out_f32 - ref))}"
    assert jnp.allclose(out, ref, atol=5e-2, rtol=5e-2), \
        f"bf16 max err {jnp.max(jnp.abs(out - ref))}"

    print("KERNEL_OK")
</pallas_src>

<mosaic_0001>
module attributes {stable_mosaic.version = 11 : i64} {
  func.func @_shortcut_kernel(%arg0: i32, %arg1: memref<2x16x64xf32, #tpu.memory_space<vmem>>, %arg2: memref<3x64x128xbf16, #tpu.memory_space<vmem>>, %arg3: memref<1x128xf32, #tpu.memory_space<vmem>>, %arg4: memref<3x128x64xbf16, #tpu.memory_space<vmem>>, %arg5: memref<1x64xf32, #tpu.memory_space<vmem>>, %arg6: memref<2x16x64xf32, #tpu.memory_space<vmem>>, %arg7: memref<36x64xbf16, #tpu.memory_space<vmem>>, %arg8: memref<36x128xbf16, #tpu.memory_space<vmem>>) attributes {dimension_semantics = [#tpu.dimension_semantics<parallel>], iteration_bounds = array<i64: 2>, scalar_prefetch = 0 : i64, scratch_operands = 2 : i64, tpu.core_type = #tpu.core_type<tc>, window_params = [{transform_indices = @transform_0, window_bounds = array<i64: 2, 16, 64>}, {pipeline_mode = #tpu.pipeline_mode<synchronous>, transform_indices = @transform_1, window_bounds = array<i64: 3, 64, 128>}, {pipeline_mode = #tpu.pipeline_mode<synchronous>, transform_indices = @transform_2, window_bounds = array<i64: 1, 128>}, {pipeline_mode = #tpu.pipeline_mode<synchronous>, transform_indices = @transform_3, window_bounds = array<i64: 3, 128, 64>}, {pipeline_mode = #tpu.pipeline_mode<synchronous>, transform_indices = @transform_4, window_bounds = array<i64: 1, 64>}, {transform_indices = @transform_5, window_bounds = array<i64: 2, 16, 64>}]} {
    %cst = arith.constant 0.000000e+00 : bf16
    %0 = vector.broadcast %cst : bf16 to vector<1x64xbf16>
    %c0 = arith.constant 0 : index
    %c0_0 = arith.constant 0 : index
    %1 = vector.load %arg7[%c0, %c0_0] : memref<36x64xbf16, #tpu.memory_space<vmem>>, vector<1x64xbf16>
    tpu.vector_store %arg7[%c0, %c0_0], %0 {strides = array<i32>} : memref<36x64xbf16, #tpu.memory_space<vmem>>, vector<1x64xbf16>,
    %cst_1 = arith.constant 0.000000e+00 : bf16
    %2 = vector.broadcast %cst_1 : bf16 to vector<1x128xbf16>
    %c0_2 = arith.constant 0 : index
    %c0_3 = arith.constant 0 : index
    %3 = vector.load %arg8[%c0_2, %c0_3] : memref<36x128xbf16, #tpu.memory_space<vmem>>, vector<1x128xbf16>
    tpu.vector_store %arg8[%c0_2, %c0_3], %2 {strides = array<i32>} : memref<36x128xbf16, #tpu.memory_space<vmem>>, vector<1x128xbf16>,
    %cst_4 = arith.constant 0.000000e+00 : bf16
    %4 = vector.broadcast %cst_4 : bf16 to vector<1x64xbf16>
    %c17 = arith.constant 17 : index
    %c0_5 = arith.constant 0 : index
    %5 = vector.load %arg7[%c17, %c0_5] : memref<36x64xbf16, #tpu.memory_space<vmem>>, vector<1x64xbf16>
    tpu.vector_store %arg7[%c17, %c0_5], %4 {strides = array<i32>} : memref<36x64xbf16, #tpu.memory_space<vmem>>, vector<1x64xbf16>,
    %cst_6 = arith.constant 0.000000e+00 : bf16
    %6 = vector.broadcast %cst_6 : bf16 to vector<1x128xbf16>
    %c17_7 = arith.constant 17 : index
    %c0_8 = arith.constant 0 : index
    %7 = vector.load %arg8[%c17_7, %c0_8] : memref<36x128xbf16, #tpu.memory_space<vmem>>, vector<1x128xbf16>
    tpu.vector_store %arg8[%c17_7, %c0_8], %6 {strides = array<i32>} : memref<36x128xbf16, #tpu.memory_space<vmem>>, vector<1x128xbf16>,
    %cst_9 = arith.constant 0.000000e+00 : bf16
    %8 = vector.broadcast %cst_9 : bf16 to vector<2x64xbf16>
    %c34 = arith.constant 34 : index
    %c0_10 = arith.constant 0 : index
    %9 = vector.load %arg7[%c34, %c0_10] : memref<36x64xbf16, #tpu.memory_space<vmem>>, vector<2x64xbf16>
    tpu.vector_store %arg7[%c34, %c0_10], %8 {strides = array<i32>} : memref<36x64xbf16, #tpu.memory_space<vmem>>, vector<2x64xbf16>,
    %cst_11 = arith.constant 0.000000e+00 : bf16
    %10 = vector.broadcast %cst_11 : bf16 to vector<2x128xbf16>
    %c34_12 = arith.constant 34 : index
    %c0_13 = arith.constant 0 : index
    %11 = vector.load %arg8[%c34_12, %c0_13] : memref<36x128xbf16, #tpu.memory_space<vmem>>, vector<2x128xbf16>
    tpu.vector_store %arg8[%c34_12, %c0_13], %10 {strides = array<i32>} : memref<36x128xbf16, #tpu.memory_space<vmem>>, vector<2x128xbf16>,
    %c0_14 = arith.constant 0 : index
    %c0_15 = arith.constant 0 : index
    %c0_16 = arith.constant 0 : index
    %12 = vector.load %arg1[%c0_14, %c0_15, %c0_16] : memref<2x16x64xf32, #tpu.memory_space<vmem>>, vector<1x16x64xf32>
    %13 = vector.shape_cast %12 : vector<1x16x64xf32> to vector<16x64xf32>
    %14 = arith.truncf %13 : vector<16x64xf32> to vector<16x64xbf16>
    %c1 = arith.constant 1 : index
    %c0_17 = arith.constant 0 : index
    %15 = vector.load %arg7[%c1, %c0_17] : memref<36x64xbf16, #tpu.memory_space<vmem>>, vector<16x64xbf16>
    tpu.vector_store %arg7[%c1, %c0_17], %14 {strides = array<i32>} : memref<36x64xbf16, #tpu.memory_space<vmem>>, vector<16x64xbf16>,
    %c1_18 = arith.constant 1 : index
    %c0_19 = arith.constant 0 : index
    %c0_20 = arith.constant 0 : index
    %16 = vector.load %arg1[%c1_18, %c0_19, %c0_20] : memref<2x16x64xf32, #tpu.memory_space<vmem>>, vector<1x16x64xf32>
    %17 = vector.shape_cast %16 : vector<1x16x64xf32> to vector<16x64xf32>
    %18 = arith.truncf %17 : vector<16x64xf32> to vector<16x64xbf16>
    %c18 = arith.constant 18 : index
    %c0_21 = arith.constant 0 : index
    %19 = vector.load %arg7[%c18, %c0_21] : memref<36x64xbf16, #tpu.memory_space<vmem>>, vector<16x64xbf16>
    tpu.vector_store %arg7[%c18, %c0_21], %18 {strides = array<i32>} : memref<36x64xbf16, #tpu.memory_space<vmem>>, vector<16x64xbf16>,
    %cst_22 = arith.constant 0.000000e+00 : f32
    %20 = vector.broadcast %cst_22 : f32 to vector<34x128xf32>
    %c0_23 = arith.constant 0 : index
    %c0_24 = arith.constant 0 : index
    %21 = vector.load %arg7[%c0_23, %c0_24] : memref<36x64xbf16, #tpu.memory_space<vmem>>, vector<34x64xbf16>
    %c0_25 = arith.constant 0 : index
    %c0_26 = arith.constant 0 : index
    %c0_27 = arith.constant 0 : index
    %22 = vector.load %arg2[%c0_25, %c0_26, %c0_27] : memref<3x64x128xbf16, #tpu.memory_space<vmem>>, vector<1x64x128xbf16>
    %23 = vector.shape_cast %22 : vector<1x64x128xbf16> to vector<64x128xbf16>
    %cst_28 = arith.constant dense<0.000000e+00> : vector<34x128xf32>
    %24 = tpu.matmul %21, %23, %cst_28 {dimension_numbers = #tpu.dot_dimension_numbers<[1], [0], [0], [1], [0, 0, 1, 1], [], []>} : vector<34x64xbf16>, vector<64x128xbf16>, vector<34x128xf32> -> vector<34x128xf32>
    %25 = arith.addf %20, %24 : vector<34x128xf32>
    %c1_29 = arith.constant 1 : index
    %c0_30 = arith.constant 0 : index
    %26 = vector.load %arg7[%c1_29, %c0_30] : memref<36x64xbf16, #tpu.memory_space<vmem>>, vector<34x64xbf16>
    %c1_31 = arith.constant 1 : index
    %c0_32 = arith.constant 0 : index
    %c0_33 = arith.constant 0 : index
    %27 = vector.load %arg2[%c1_31, %c0_32, %c0_33] : memref<3x64x128xbf16, #tpu.memory_space<vmem>>, vector<1x64x128xbf16>
    %28 = vector.shape_cast %27 : vector<1x64x128xbf16> to vector<64x128xbf16>
    %cst_34 = arith.constant dense<0.000000e+00> : vector<34x128xf32>
    %29 = tpu.matmul %26, %28, %cst_34 {dimension_numbers = #tpu.dot_dimension_numbers<[1], [0], [0], [1], [0, 0, 1, 1], [], []>} : vector<34x64xbf16>, vector<64x128xbf16>, vector<34x128xf32> -> vector<34x128xf32>
    %30 = arith.addf %25, %29 : vector<34x128xf32>
    %c2 = arith.constant 2 : index
    %c0_35 = arith.constant 0 : index
    %31 = vector.load %arg7[%c2, %c0_35] : memref<36x64xbf16, #tpu.memory_space<vmem>>, vector<34x64xbf16>
    %c2_36 = arith.constant 2 : index
    %c0_37 = arith.constant 0 : index
    %c0_38 = arith.constant 0 : index
    %32 = vector.load %arg2[%c2_36, %c0_37, %c0_38] : memref<3x64x128xbf16, #tpu.memory_space<vmem>>, vector<1x64x128xbf16>
    %33 = vector.shape_cast %32 : vector<1x64x128xbf16> to vector<64x128xbf16>
    %cst_39 = arith.constant dense<0.000000e+00> : vector<34x128xf32>
    %34 = tpu.matmul %31, %33, %cst_39 {dimension_numbers = #tpu.dot_dimension_numbers<[1], [0], [0], [1], [0, 0, 1, 1], [], []>} : vector<34x64xbf16>, vector<64x128xbf16>, vector<34x128xf32> -> vector<34x128xf32>
    %35 = arith.addf %30, %34 : vector<34x128xf32>
    %c0_40 = arith.constant 0 : index
    %c0_41 = arith.constant 0 : index
    %36 = vector.load %arg3[%c0_40, %c0_41] : memref<1x128xf32, #tpu.memory_space<vmem>>, vector<1x128xf32>
    %37 = vector.broadcast %36 : vector<1x128xf32> to vector<34x128xf32>
    %38 = arith.addf %35, %37 : vector<34x128xf32>
    %cst_42 = arith.constant 0.000000e+00 : f32
    %39 = vector.broadcast %cst_42 : f32 to vector<34x128xf32>
    %40 = arith.maximumf %38, %39 : vector<34x128xf32>
    %41 = vector.extract_strided_slice %40 {offsets = [0, 0], sizes = [16, 128], strides = [1, 1]} : vector<34x128xf32> to vector<16x128xf32>
    %42 = arith.truncf %41 : vector<16x128xf32> to vector<16x128xbf16>
    %c1_43 = arith.constant 1 : index
    %c0_44 = arith.constant 0 : index
    %43 = vector.load %arg8[%c1_43, %c0_44] : memref<36x128xbf16, #tpu.memory_space<vmem>>, vector<16x128xbf16>
    tpu.vector_store %arg8[%c1_43, %c0_44], %42 {strides = array<i32>} : memref<36x128xbf16, #tpu.memory_space<vmem>>, vector<16x128xbf16>,
    %44 = vector.extract_strided_slice %40 {offsets = [17, 0], sizes = [16, 128], strides = [1, 1]} : vector<34x128xf32> to vector<16x128xf32>
    %45 = arith.truncf %44 : vector<16x128xf32> to vector<16x128xbf16>
    %c18_45 = arith.constant 18 : index
    %c0_46 = arith.constant 0 : index
    %46 = vector.load %arg8[%c18_45, %c0_46] : memref<36x128xbf16, #tpu.memory_space<vmem>>, vector<16x128xbf16>
    tpu.vector_store %arg8[%c18_45, %c0_46], %45 {strides = array<i32>} : memref<36x128xbf16, #tpu.memory_space<vmem>>, vector<16x128xbf16>,
    %cst_47 = arith.constant 0.000000e+00 : f32
    %47 = vector.broadcast %cst_47 : f32 to vector<34x64xf32>
    %c0_48 = arith.constant 0 : index
    %c0_49 = arith.constant 0 : index
    %48 = vector.load %arg8[%c0_48, %c0_49] : memref<36x128xbf16, #tpu.memory_space<vmem>>, vector<34x128xbf16>
    %c0_50 = arith.constant 0 : index
    %c0_51 = arith.constant 0 : index
    %c0_52 = arith.constant 0 : index
    %49 = vector.load %arg4[%c0_50, %c0_51, %c0_52] : memref<3x128x64xbf16, #tpu.memory_space<vmem>>, vector<1x128x64xbf16>
    %50 = vector.shape_cast %49 : vector<1x128x64xbf16> to vector<128x64xbf16>
    %cst_53 = arith.constant dense<0.000000e+00> : vector<34x64xf32>
    %51 = tpu.matmul %48, %50, %cst_53 {dimension_numbers = #tpu.dot_dimension_numbers<[1], [0], [0], [1], [0, 0, 1, 1], [], []>} : vector<34x128xbf16>, vector<128x64xbf16>, vector<34x64xf32> -> vector<34x64xf32>
    %52 = arith.addf %47, %51 : vector<34x64xf32>
    %c1_54 = arith.constant 1 : index
    %c0_55 = arith.constant 0 : index
    %53 = vector.load %arg8[%c1_54, %c0_55] : memref<36x128xbf16, #tpu.memory_space<vmem>>, vector<34x128xbf16>
    %c1_56 = arith.constant 1 : index
    %c0_57 = arith.constant 0 : index
    %c0_58 = arith.constant 0 : index
    %54 = vector.load %arg4[%c1_56, %c0_57, %c0_58] : memref<3x128x64xbf16, #tpu.memory_space<vmem>>, vector<1x128x64xbf16>
    %55 = vector.shape_cast %54 : vector<1x128x64xbf16> to vector<128x64xbf16>
    %cst_59 = arith.constant dense<0.000000e+00> : vector<34x64xf32>
    %56 = tpu.matmul %53, %55, %cst_59 {dimension_numbers = #tpu.dot_dimension_numbers<[1], [0], [0], [1], [0, 0, 1, 1], [], []>} : vector<34x128xbf16>, vector<128x64xbf16>, vector<34x64xf32> -> vector<34x64xf32>
    %57 = arith.addf %52, %56 : vector<34x64xf32>
    %c2_60 = arith.constant 2 : index
    %c0_61 = arith.constant 0 : index
    %58 = vector.load %arg8[%c2_60, %c0_61] : memref<36x128xbf16, #tpu.memory_space<vmem>>, vector<34x128xbf16>
    %c2_62 = arith.constant 2 : index
    %c0_63 = arith.constant 0 : index
    %c0_64 = arith.constant 0 : index
    %59 = vector.load %arg4[%c2_62, %c0_63, %c0_64] : memref<3x128x64xbf16, #tpu.memory_space<vmem>>, vector<1x128x64xbf16>
    %60 = vector.shape_cast %59 : vector<1x128x64xbf16> to vector<128x64xbf16>
    %cst_65 = arith.constant dense<0.000000e+00> : vector<34x64xf32>
    %61 = tpu.matmul %58, %60, %cst_65 {dimension_numbers = #tpu.dot_dimension_numbers<[1], [0], [0], [1], [0, 0, 1, 1], [], []>} : vector<34x128xbf16>, vector<128x64xbf16>, vector<34x64xf32> -> vector<34x64xf32>
    %62 = arith.addf %57, %61 : vector<34x64xf32>
    %c0_66 = arith.constant 0 : index
    %c0_67 = arith.constant 0 : index
    %c0_68 = arith.constant 0 : index
    %63 = vector.load %arg1[%c0_66, %c0_67, %c0_68] : memref<2x16x64xf32, #tpu.memory_space<vmem>>, vector<1x16x64xf32>
    %64 = vector.shape_cast %63 : vector<1x16x64xf32> to vector<16x64xf32>
    %65 = vector.extract_strided_slice %62 {offsets = [0, 0], sizes = [16, 64], strides = [1, 1]} : vector<34x64xf32> to vector<16x64xf32>
    %66 = arith.addf %64, %65 : vector<16x64xf32>
    %c0_69 = arith.constant 0 : index
    %c0_70 = arith.constant 0 : index
    %67 = vector.load %arg5[%c0_69, %c0_70] : memref<1x64xf32, #tpu.memory_space<vmem>>, vector<1x64xf32>
    %68 = vector.broadcast %67 : vector<1x64xf32> to vector<16x64xf32>
    %69 = arith.addf %66, %68 : vector<16x64xf32>
    %c0_71 = arith.constant 0 : index
    %c0_72 = arith.constant 0 : index
    %c0_73 = arith.constant 0 : index
    %70 = vector.load %arg6[%c0_71, %c0_72, %c0_73] : memref<2x16x64xf32, #tpu.memory_space<vmem>>, vector<1x16x64xf32>
    %71 = vector.shape_cast %70 : vector<1x16x64xf32> to vector<16x64xf32>
    %72 = vector.shape_cast %69 : vector<16x64xf32> to vector<1x16x64xf32>
    tpu.vector_store %arg6[%c0_71, %c0_72, %c0_73], %72 {strides = array<i32>} : memref<2x16x64xf32, #tpu.memory_space<vmem>>, vector<1x16x64xf32>,
    %c1_74 = arith.constant 1 : index
    %c0_75 = arith.constant 0 : index
    %c0_76 = arith.constant 0 : index
    %73 = vector.load %arg1[%c1_74, %c0_75, %c0_76] : memref<2x16x64xf32, #tpu.memory_space<vmem>>, vector<1x16x64xf32>
    %74 = vector.shape_cast %73 : vector<1x16x64xf32> to vector<16x64xf32>
    %75 = vector.extract_strided_slice %62 {offsets = [17, 0], sizes = [16, 64], strides = [1, 1]} : vector<34x64xf32> to vector<16x64xf32>
    %76 = arith.addf %74, %75 : vector<16x64xf32>
    %c0_77 = arith.constant 0 : index
    %c0_78 = arith.constant 0 : index
    %77 = vector.load %arg5[%c0_77, %c0_78] : memref<1x64xf32, #tpu.memory_space<vmem>>, vector<1x64xf32>
    %78 = vector.broadcast %77 : vector<1x64xf32> to vector<16x64xf32>
    %79 = arith.addf %76, %78 : vector<16x64xf32>
    %c1_79 = arith.constant 1 : index
    %c0_80 = arith.constant 0 : index
    %c0_81 = arith.constant 0 : index
    %80 = vector.load %arg6[%c1_79, %c0_80, %c0_81] : memref<2x16x64xf32, #tpu.memory_space<vmem>>, vector<1x16x64xf32>
    %81 = vector.shape_cast %80 : vector<1x16x64xf32> to vector<16x64xf32>
    %82 = vector.shape_cast %79 : vector<16x64xf32> to vector<1x16x64xf32>
    tpu.vector_store %arg6[%c1_79, %c0_80, %c0_81], %82 {strides = array<i32>} : memref<2x16x64xf32, #tpu.memory_space<vmem>>, vector<1x16x64xf32>,
    return
  }
  func.func @transform_0(%arg0: i32) -> (i32, i32, i32) {
    %c0_i32 = arith.constant 0 : i32
    %c0_i32_0 = arith.constant 0 : i32
    %c0_i32_1 = arith.constant 0 : i32
    return %arg0, %c0_i32, %c0_i32_0 : i32, i32, i32
  }
  func.func @transform_1(%arg0: i32) -> (i32, i32, i32) {
    %c0_i32 = arith.constant 0 : i32
    %c0_i32_0 = arith.constant 0 : i32
    %c0_i32_1 = arith.constant 0 : i32
    %c0_i32_2 = arith.constant 0 : i32
    return %c0_i32, %c0_i32_0, %c0_i32_1 : i32, i32, i32
  }
  func.func @transform_2(%arg0: i32) -> (i32, i32) {
    %c0_i32 = arith.constant 0 : i32
    %c0_i32_0 = arith.constant 0 : i32
    %c0_i32_1 = arith.constant 0 : i32
    return %c0_i32, %c0_i32_0 : i32, i32
  }
  func.func @transform_3(%arg0: i32) -> (i32, i32, i32) {
    %c0_i32 = arith.constant 0 : i32
    %c0_i32_0 = arith.constant 0 : i32
    %c0_i32_1 = arith.constant 0 : i32
    %c0_i32_2 = arith.constant 0 : i32
    return %c0_i32, %c0_i32_0, %c0_i32_1 : i32, i32, i32
  }
  func.func @transform_4(%arg0: i32) -> (i32, i32) {
    %c0_i32 = arith.constant 0 : i32
    %c0_i32_0 = arith.constant 0 : i32
    %c0_i32_1 = arith.constant 0 : i32
    return %c0_i32, %c0_i32_0 : i32, i32
  }
  func.func @transform_5(%arg0: i32) -> (i32, i32, i32) {
    %c0_i32 = arith.constant 0 : i32
    %c0_i32_0 = arith.constant 0 : i32
    %c0_i32_1 = arith.constant 0 : i32
    return %arg0, %c0_i32, %c0_i32_0 : i32, i32, i32
  }
}

</mosaic_0001>

<llo_original>
// kernel: tile.13
$region0: #{tile.13}
  #allocation0 [shape = 's32[1]{0}', space=sflag, size = 0x4, scoped, tag = 'scoped memory for tile.13']
  %s0 = inlined_call_operand.vmem [shape: f32[8], index: 0, kind: input, shape index: {}]
  %s1 = inlined_call_operand.vmem [shape: f32[16,8], index: 1, kind: output, shape index: {}]
  // Predicated region
  $region2: #{tile.13} parent=0 // pred_check
    _
  $region3: #{tile.13} parent=0 // pred_check_branch
    %3 = sbr.rel (0) target = $region5
  $region4: #{tile.13} parent=0 // pred_region
    _
  $region5: #{tile.13} parent=0 // pred_fallthru
    _
  %v4 = vld [vmem:[%s0] ss:$0 sm:$0xff]
  %5 = vst [vmem:[%s1] sm:$0xff] %v4
  %s6 = scalar_lea.vmem %s1, 8
  %7 = vst [vmem:[%s6] sm:$0xff] %v4

// kernel: tile.14
$region0: #{tile.14}
  %s0 = inlined_call_operand.vmem [shape: f32[16,8], index: 0, kind: input, shape index: {}]
  %s1 = inlined_call_operand.vmem [shape: f32[1,128], index: 1, kind: output, shape index: {}]
  $region1: #{tile.14} parent=0
    #allocation0 [shape = 'u8[4096]{0}', space=vmem, size = 0x1000, scoped, tag = 'scoped mem for output reshape']
    %v2 = vld [vmem:[%s0] sm:$0x1]
    %vm3 = vcmask 64512
    %4 = vst.msk [vmem:[#allocation0] sm:$0x1] %vm3, %v2
    %s5 = scalar_lea.vmem %s0, 15
    %v6 = vld [vmem:[%s5] sm:$0x1]
    %7 = vrot.lane.b32.xlu0 %v6, 120
    %v8 = vpop.permute.xlu0 %7
    %vm9 = vcmask 1048512
    %10 = vst.msk [vmem:[#allocation0] sm:$0x1] %vm9, %v8
    %s11 = scalar_lea.vmem %s0, 14
    %v12 = vld [vmem:[%s11] sm:$0x1]
    %13 = vrot.lane.b32.xlu0 %v12, 112
    %v14 = vpop.permute.xlu0 %13
    %vm15 = vcmask 982912
    %16 = vst.msk [vmem:[#allocation0] sm:$0x1] %vm15, %v14
    %s17 = scalar_lea.vmem %s0, 13
    %v18 = vld [vmem:[%s17] sm:$0x1]
    %19 = vrot.lane.b32.xlu0 %v18, 104
    %v20 = vpop.permute.xlu0 %19
    %vm21 = vcmask 917312
    %22 = vst.msk [vmem:[#allocation0] sm:$0x1] %vm21, %v20
    %s23 = scalar_lea.vmem %s0, 12
    %v24 = vld [vmem:[%s23] sm:$0x1]
    %25 = vrot.lane.b32.xlu0 %v24, 96
    %v26 = vpop.permute.xlu0 %25
    %vm27 = vcmask 851712
    %28 = vst.msk [vmem:[#allocation0] sm:$0x1] %vm27, %v26
    %s29 = scalar_lea.vmem %s0, 11
    %v30 = vld [vmem:[%s29] sm:$0x1]
    %31 = vrot.lane.b32.xlu0 %v30, 88
    %v32 = vpop.permute.xlu0 %31
    %vm33 = vcmask 786112
    %34 = vst.msk [vmem:[#allocation0] sm:$0x1] %vm33, %v32
    %s35 = scalar_lea.vmem %s0, 10
    %v36 = vld [vmem:[%s35] sm:$0x1]
    %37 = vrot.lane.b32.xlu0 %v36, 80
    %v38 = vpop.permute.xlu0 %37
    %vm39 = vcmask 720512
    %40 = vst.msk [vmem:[#allocation0] sm:$0x1] %vm39, %v38
    %s41 = scalar_lea.vmem %s0, 9
    %v42 = vld [vmem:[%s41] sm:$0x1]
    %43 = vrot.lane.b32.xlu0 %v42, 72
    %v44 = vpop.permute.xlu0 %43
    %vm45 = vcmask 654912
    %46 = vst.msk [vmem:[#allocation0] sm:$0x1] %vm45, %v44
    %s47 = scalar_lea.vmem %s0, 8
    %v48 = vld [vmem:[%s47] sm:$0x1]
    %49 = vrot.lane.b32.xlu0 %v48, 64
    %v50 = vpop.permute.xlu0 %49
    %vm51 = vcmask 589312
    %52 = vst.msk [vmem:[#allocation0] sm:$0x1] %vm51, %v50
    %s53 = scalar_lea.vmem %s0, 7
    %v54 = vld [vmem:[%s53] sm:$0x1]
    %55 = vrot.lane.b32.xlu0 %v54, 56
    %v56 = vpop.permute.xlu0 %55
    %vm57 = vcmask 523712
    %58 = vst.msk [vmem:[#allocation0] sm:$0x1] %vm57, %v56
    %s59 = scalar_lea.vmem %s0, 6
    %v60 = vld [vmem:[%s59] sm:$0x1]
    %61 = vrot.lane.b32.xlu0 %v60, 48
    %v62 = vpop.permute.xlu0 %61
    %vm63 = vcmask 458112
    %64 = vst.msk [vmem:[#allocation0] sm:$0x1] %vm63, %v62
    %s65 = scalar_lea.vmem %s0, 5
    %v66 = vld [vmem:[%s65] sm:$0x1]
    %67 = vrot.lane.b32.xlu0 %v66, 40
    %v68 = vpop.permute.xlu0 %67
    %vm69 = vcmask 392512
    %70 = vst.msk [vmem:[#allocation0] sm:$0x1] %vm69, %v68
    %s71 = scalar_lea.vmem %s0, 4
    %v72 = vld [vmem:[%s71] sm:$0x1]
    %73 = vrot.lane.b32.xlu0 %v72, 32
    %v74 = vpop.permute.xlu0 %73
    %vm75 = vcmask 326912
    %76 = vst.msk [vmem:[#allocation0] sm:$0x1] %vm75, %v74
    %s77 = scalar_lea.vmem %s0, 3
    %v78 = vld [vmem:[%s77] sm:$0x1]
    %79 = vrot.lane.b32.xlu0 %v78, 24
    %v80 = vpop.permute.xlu0 %79
    %vm81 = vcmask 261312
    %82 = vst.msk [vmem:[#allocation0] sm:$0x1] %vm81, %v80
    %s83 = scalar_lea.vmem %s0, 2
    %v84 = vld [vmem:[%s83] sm:$0x1]
    %85 = vrot.lane.b32.xlu0 %v84, 16
    %v86 = vpop.permute.xlu0 %85
    %vm87 = vcmask 195712
    %88 = vst.msk [vmem:[#allocation0] sm:$0x1] %vm87, %v86
    %s89 = scalar_lea.vmem %s0, 1
    %v90 = vld [vmem:[%s89] sm:$0x1]
    %91 = vrot.lane.b32.xlu0 %v90, 8
    %v92 = vpop.permute.xlu0 %91
    %vm93 = vcmask 130112
    %94 = vst.msk [vmem:[#allocation0] sm:$0x1] %vm93, %v92
    %s96 = ssub.s32 2, 1
    %v97 = vld [vmem:[#allocation0] sm:%s96]
    %s99 = ssub.s32 2, 1
    %100 = vst [vmem:[%s1] sm:%s99] %v97

// kernel: tile.18
$region0: #{tile.18}
  #allocation0 [shape = 's32[1]{0}', space=sflag, size = 0x4, scoped, tag = 'scoped memory for tile.18']
  %s0 = inlined_call_operand.vmem [shape: f32[4], index: 0, kind: input, shape index: {}]
  %s1 = inlined_call_operand.vmem [shape: f32[16,4], index: 1, kind: output, shape index: {}]
  // Predicated region
  $region2: #{tile.18} parent=0 // pred_check
    _
  $region3: #{tile.18} parent=0 // pred_check_branch
    %3 = sbr.rel (0) target = $region5
  $region4: #{tile.18} parent=0 // pred_region
    _
  $region5: #{tile.18} parent=0 // pred_fallthru
    _
  %v4 = vld [vmem:[%s0] ss:$0 sm:$0xff]
  %5 = vst [vmem:[%s1] sm:$0xff] %v4
  %s6 = scalar_lea.vmem %s1, 8
  %7 = vst [vmem:[%s6] sm:$0xff] %v4

// kernel: tile.19
$region0: #{tile.19}
  %s0 = inlined_call_operand.vmem [shape: f32[16,4], index: 0, kind: input, shape index: {}]
  %s1 = inlined_call_operand.vmem [shape: f32[1,64], index: 1, kind: output, shape index: {}]
  $region1: #{tile.19} parent=0
    #allocation0 [shape = 'u8[4096]{0}', space=vmem, size = 0x1000, scoped, tag = 'scoped mem for output reshape']
    %v2 = vld [vmem:[%s0] sm:$0x1]
    %vm3 = vcmask 31744
    %4 = vst.msk [vmem:[#allocation0] sm:$0x1] %vm3, %v2
    %s5 = scalar_lea.vmem %s0, 15
    %v6 = vld [vmem:[%s5] sm:$0x1]
    %7 = vrot.lane.b32.xlu0 %v6, 60
    %v8 = vpop.permute.xlu0 %7
    %vm9 = vcmask 523744
    %10 = vst.msk [vmem:[#allocation0] sm:$0x1] %vm9, %v8
    %s11 = scalar_lea.vmem %s0, 14
    %v12 = vld [vmem:[%s11] sm:$0x1]
    %13 = vrot.lane.b32.xlu0 %v12, 56
    %v14 = vpop.permute.xlu0 %13
    %vm15 = vcmask 490944
    %16 = vst.msk [vmem:[#allocation0] sm:$0x1] %vm15, %v14
    %s17 = scalar_lea.vmem %s0, 13
    %v18 = vld [vmem:[%s17] sm:$0x1]
    %19 = vrot.lane.b32.xlu0 %v18, 52
    %v20 = vpop.permute.xlu0 %19
    %vm21 = vcmask 458144
    %22 = vst.msk [vmem:[#allocation0] sm:$0x1] %vm21, %v20
    %s23 = scalar_lea.vmem %s0, 12
    %v24 = vld [vmem:[%s23] sm:$0x1]
    %25 = vrot.lane.b32.xlu0 %v24, 48
    %v26 = vpop.permute.xlu0 %25
    %vm27 = vcmask 425344
    %28 = vst.msk [vmem:[#allocation0] sm:$0x1] %vm27, %v26
    %s29 = scalar_lea.vmem %s0, 11
    %v30 = vld [vmem:[%s29] sm:$0x1]
    %31 = vrot.lane.b32.xlu0 %v30, 44
    %v32 = vpop.permute.xlu0 %31
    %vm33 = vcmask 392544
    %34 = vst.msk [vmem:[#allocation0] sm:$0x1] %vm33, %v32
    %s35 = scalar_lea.vmem %s0, 10
    %v36 = vld [vmem:[%s35] sm:$0x1]
    %37 = vrot.lane.b32.xlu0 %v36, 40
    %v38 = vpop.permute.xlu0 %37
    %vm39 = vcmask 359744
    %40 = vst.msk [vmem:[#allocation0] sm:$0x1] %vm39, %v38
    %s41 = scalar_lea.vmem %s0, 9
    %v42 = vld [vmem:[%s41] sm:$0x1]
    %43 = vrot.lane.b32.xlu0 %v42, 36
    %v44 = vpop.permute.xlu0 %43
    %vm45 = vcmask 326944
    %46 = vst.msk [vmem:[#allocation0] sm:$0x1] %vm45, %v44
    %s47 = scalar_lea.vmem %s0, 8
    %v48 = vld [vmem:[%s47] sm:$0x1]
    %49 = vrot.lane.b32.xlu0 %v48, 32
    %v50 = vpop.permute.xlu0 %49
    %vm51 = vcmask 294144
    %52 = vst.msk [vmem:[#allocation0] sm:$0x1] %vm51, %v50
    %s53 = scalar_lea.vmem %s0, 7
    %v54 = vld [vmem:[%s53] sm:$0x1]
    %55 = vrot.lane.b32.xlu0 %v54, 28
    %v56 = vpop.permute.xlu0 %55
    %vm57 = vcmask 261344
    %58 = vst.msk [vmem:[#allocation0] sm:$0x1] %vm57, %v56
    %s59 = scalar_lea.vmem %s0, 6
    %v60 = vld [vmem:[%s59] sm:$0x1]
    %61 = vrot.lane.b32.xlu0 %v60, 24
    %v62 = vpop.permute.xlu0 %61
    %vm63 = vcmask 228544
    %64 = vst.msk [vmem:[#allocation0] sm:$0x1] %vm63, %v62
    %s65 = scalar_lea.vmem %s0, 5
    %v66 = vld [vmem:[%s65] sm:$0x1]
    %67 = vrot.lane.b32.xlu0 %v66, 20
    %v68 = vpop.permute.xlu0 %67
    %vm69 = vcmask 195744
    %70 = vst.msk [vmem:[#allocation0] sm:$0x1] %vm69, %v68
    %s71 = scalar_lea.vmem %s0, 4
    %v72 = vld [vmem:[%s71] sm:$0x1]
    %73 = vrot.lane.b32.xlu0 %v72, 16
    %v74 = vpop.permute.xlu0 %73
    %vm75 = vcmask 162944
    %76 = vst.msk [vmem:[#allocation0] sm:$0x1] %vm75, %v74
    %s77 = scalar_lea.vmem %s0, 3
    %v78 = vld [vmem:[%s77] sm:$0x1]
    %79 = vrot.lane.b32.xlu0 %v78, 12
    %v80 = vpop.permute.xlu0 %79
    %vm81 = vcmask 130144
    %82 = vst.msk [vmem:[#allocation0] sm:$0x1] %vm81, %v80
    %s83 = scalar_lea.vmem %s0, 2
    %v84 = vld [vmem:[%s83] sm:$0x1]
    %85 = vrot.lane.b32.xlu0 %v84, 8
    %v86 = vpop.permute.xlu0 %85
    %vm87 = vcmask 97344
    %88 = vst.msk [vmem:[#allocation0] sm:$0x1] %vm87, %v86
    %s89 = scalar_lea.vmem %s0, 1
    %v90 = vld [vmem:[%s89] sm:$0x1]
    %91 = vrot.lane.b32.xlu0 %v90, 4
    %v92 = vpop.permute.xlu0 %91
    %vm93 = vcmask 64544
    %94 = vst.msk [vmem:[#allocation0] sm:$0x1] %vm93, %v92
    %s96 = ssub.s32 2, 1
    %v97 = vld [vmem:[#allocation0] sm:%s96]
    %s99 = ssub.s32 2, 1
    %100 = vst [vmem:[%s1] sm:%s99] %v97

// kernel: shortcut_block_forward.1
$region0: #{shortcut_block_forward.1}
  #allocation0 [shape = 'u32[]', space=smem, size = 0x4, offset = 0x4, fixed_abs, tag = 'smem constant byte address 0x4 - core index']
  #allocation1 [shape = 'u32[72,128]{1,0:T(1,128)}', space=vmem, size = 0x9000, scoped, tag = 'internal scratch']
  #allocation2 [shape = 'bf16[36,64]{1,0:T(8,128)(2,1)}', space=vmem, size = 0x2800, scoped, tag = 'scratch operand']
  #allocation3 [shape = 'bf16[36,128]{1,0:T(8,128)(2,1)}', space=vmem, size = 0x2800, scoped, tag = 'scratch operand']
  %s0 = inlined_call_operand.vmem [shape: f32[4,16,64], index: 0, kind: input, shape index: {}]
  %s1 = inlined_call_operand.vmem [shape: bf16[3,64,128], index: 1, kind: input, shape index: {}]
  %s2 = inlined_call_operand.vmem [shape: f32[1,128], index: 2, kind: input, shape index: {}]
  %s3 = inlined_call_operand.vmem [shape: bf16[3,128,64], index: 3, kind: input, shape index: {}]
  %s4 = inlined_call_operand.vmem [shape: f32[1,64], index: 4, kind: input, shape index: {}]
  %s5 = inlined_call_operand.vmem [shape: f32[4,16,64], index: 5, kind: output, shape index: {}]
  %s6 = sld [smem:[#allocation0]]
  $region53: #{shortcut_block_forward.1} parent=0
    _
  %s8 = ssub.s32 1, %s6
  %s9 = scalar_select 0, %s8, %s6
  loop: start=0, step=1, limit=4
  $region2: #{shortcut_block_forward.1} parent=0 // loop_pre_header
    _
  $region3: #{shortcut_block_forward.1} parent=0 // loop_header
    %s11 = sphi 0, %s15
    %p12 = scmp.ge.s32.totalorder %s11, 4
    %s21 = sphi 0, %s23
    %s24 = sphi 0, %s21
    %s25 = sphi 0, %s24
    %s41 = sphi 0, %s25
    %s45 = sphi 0, %s45
    %s47 = sphi 0, %s45
    %s48 = sphi 0, %s47
    %s62 = sphi 0, %s48
    %s66 = sphi 0, %s66
    %s68 = sphi 0, %s66
    %s69 = sphi 0, %s68
    %s83 = sphi 0, %s69
    %s87 = sphi 0, %s87
    %s89 = sphi 0, %s87
    %s90 = sphi 0, %s89
    %s104 = sphi 0, %s90
    %s108 = sphi 0, %s108
    %s110 = sphi 0, %s108
    %s111 = sphi 0, %s110
    %s125 = sphi 0, %s111
    %s131 = sphi 0, %s133
    %s134 = sphi 0, %s131
    %s135 = sphi 0, %s134
    %s151 = sphi 0, %s135
  $region4: #{shortcut_block_forward.1} parent=0 // loop_header_branch
    %14 = sbr.rel (%p12) target = $region8
  $region5: #{shortcut_block_forward.1} parent=0 // loop_body
    %s16 = ssub.s32 %s11, 1
    %s17 = ssub.s32 %s11, 2
    %s18 = sadd.s32 %s11, 1
    %s19 = ssub.s32 %s11, %s18
    %p20 = scmp.eq.s32.totalorder %s19, 0
    %s22 = sadd.s32 %s21, 1
    %s23 = scalar_select %p20, %s21, %s22
    %p26 = pneg %p20
    %p27 = scmp.eq.s32.totalorder %s11, 1
    %p28 = por %p26, %p27
    %p29 = scmp.ne.s32.totalorder %s21, %s24
    %p30 = scmp.eq.s32.totalorder %s11, 0
    %p31 = por %p29, %p30
    %p32 = scmp.ne.s32.totalorder %s21, %s24
    %p33 = scmp.eq.s32.totalorder %s16, 1
    %p34 = por %p32, %p33
    %p35 = scmp.ne.s32.totalorder %s24, %s25
    %p36 = scmp.eq.s32.totalorder %s16, 0
    %p37 = por %p35, %p36
    %p38 = scmp.ne.s32.totalorder %s24, %s25
    %p39 = scmp.eq.s32.totalorder %s17, 1
    %p40 = por %p38, %p39
    %p42 = scmp.ne.s32.totalorder %s25, %s41
    %p43 = scmp.eq.s32.totalorder %s17, 0
    %p44 = por %p42, %p43
    %s46 = sadd.s32 %s45, 1
    %p49 = scmp.eq.s32.totalorder %s11, 1
    %p50 = scmp.ne.s32.totalorder %s45, %s47
    %p51 = scmp.eq.s32.totalorder %s11, 0
    %p52 = por %p50, %p51
    %p53 = scmp.ne.s32.totalorder %s45, %s47
    %p54 = scmp.eq.s32.totalorder %s16, 1
    %p55 = por %p53, %p54
    %p56 = scmp.ne.s32.totalorder %s47, %s48
    %p57 = scmp.eq.s32.totalorder %s16, 0
    %p58 = por %p56, %p57
    %p59 = scmp.ne.s32.totalorder %s47, %s48
    %p60 = scmp.eq.s32.totalorder %s17, 1
    %p61 = por %p59, %p60
    %p63 = scmp.ne.s32.totalorder %s48, %s62
    %p64 = scmp.eq.s32.totalorder %s17, 0
    %p65 = por %p63, %p64
    %s67 = sadd.s32 %s66, 1
    %p70 = scmp.eq.s32.totalorder %s11, 1
    %p71 = scmp.ne.s32.totalorder %s66, %s68
    %p72 = scmp.eq.s32.totalorder %s11, 0
    %p73 = por %p71, %p72
    %p74 = scmp.ne.s32.totalorder %s66, %s68
    %p75 = scmp.eq.s32.totalorder %s16, 1
    %p76 = por %p74, %p75
    %p77 = scmp.ne.s32.totalorder %s68, %s69
    %p78 = scmp.eq.s32.totalorder %s16, 0
    %p79 = por %p77, %p78
    %p80 = scmp.ne.s32.totalorder %s68, %s69
    %p81 = scmp.eq.s32.totalorder %s17, 1
    %p82 = por %p80, %p81
    %p84 = scmp.ne.s32.totalorder %s69, %s83
    %p85 = scmp.eq.s32.totalorder %s17, 0
    %p86 = por %p84, %p85
    %s88 = sadd.s32 %s87, 1
    %p91 = scmp.eq.s32.totalorder %s11, 1
    %p92 = scmp.ne.s32.totalorder %s87, %s89
    %p93 = scmp.eq.s32.totalorder %s11, 0
    %p94 = por %p92, %p93
    %p95 = scmp.ne.s32.totalorder %s87, %s89
    %p96 = scmp.eq.s32.totalorder %s16, 1
    %p97 = por %p95, %p96
    %p98 = scmp.ne.s32.totalorder %s89, %s90
    %p99 = scmp.eq.s32.totalorder %s16, 0
    %p100 = por %p98, %p99
    %p101 = scmp.ne.s32.totalorder %s89, %s90
    %p102 = scmp.eq.s32.totalorder %s17, 1
    %p103 = por %p101, %p102
    %p105 = scmp.ne.s32.totalorder %s90, %s104
    %p106 = scmp.eq.s32.totalorder %s17, 0
    %p107 = por %p105, %p106
    %s109 = sadd.s32 %s108, 1
    %p112 = scmp.eq.s32.totalorder %s11, 1
    %p113 = scmp.ne.s32.totalorder %s108, %s110
    %p114 = scmp.eq.s32.totalorder %s11, 0
    %p115 = por %p113, %p114
    %p116 = scmp.ne.s32.totalorder %s108, %s110
    %p117 = scmp.eq.s32.totalorder %s16, 1
    %p118 = por %p116, %p117
    %p119 = scmp.ne.s32.totalorder %s110, %s111
    %p120 = scmp.eq.s32.totalorder %s16, 0
    %p121 = por %p119, %p120
    %p122 = scmp.ne.s32.totalorder %s110, %s111
    %p123 = scmp.eq.s32.totalorder %s17, 1
    %p124 = por %p122, %p123
    %p126 = scmp.ne.s32.totalorder %s111, %s125
    %p127 = scmp.eq.s32.totalorder %s17, 0
    %p128 = por %p126, %p127
    %s129 = ssub.s32 %s11, %s18
    %p130 = scmp.eq.s32.totalorder %s129, 0
    %s132 = sadd.s32 %s131, 1
    %s133 = scalar_select %p130, %s131, %s132
    %p136 = pneg %p130
    %p137 = scmp.eq.s32.totalorder %s11, 1
    %p138 = por %p136, %p137
    %p139 = scmp.ne.s32.totalorder %s131, %s134
    %p140 = scmp.eq.s32.totalorder %s11, 0
    %p141 = por %p139, %p140
    %p142 = scmp.ne.s32.totalorder %s131, %s134
    %p143 = scmp.eq.s32.totalorder %s16, 1
    %p144 = por %p142, %p143
    %p145 = scmp.ne.s32.totalorder %s134, %s135
    %p146 = scmp.eq.s32.totalorder %s16, 0
    %p147 = por %p145, %p146
    %p148 = scmp.ne.s32.totalorder %s134, %s135
    %p149 = scmp.eq.s32.totalorder %s17, 1
    %p150 = por %p148, %p149
    %p152 = scmp.ne.s32.totalorder %s135, %s151
    %p153 = scmp.eq.s32.totalorder %s17, 0
    %p154 = por %p152, %p153
    %p155 = scmp.le.s32.totalorder 1, %s11
    %p156 = scmp.lt.s32.totalorder %s11, 3
    %p157 = pnand %p155, %p156
    %p158 = pneg %p157
    // Predicated region
    $region9: #{shortcut_block_forward.1} parent=5 // pred_check
      _
    $region10: #{shortcut_block_forward.1} parent=5 // pred_check_branch
      %160 = sbr.rel (%p157) target = $region12
    $region11: #{shortcut_block_forward.1} parent=5 // pred_region
      %s161 = ssub.s32 %s11, 1
      // Predicated region
      $region13: #{shortcut_block_forward.1} parent=11 // pred_check
        %p162 = pneg %p58
      $region14: #{shortcut_block_forward.1} parent=11 // pred_check_branch
        %164 = sbr.rel (%p162) target = $region16
      $region15: #{shortcut_block_forward.1} parent=11 // pred_region
        _
      $region16: #{shortcut_block_forward.1} parent=11 // pred_fallthru
        _
      // Predicated region
      $region17: #{shortcut_block_forward.1} parent=11 // pred_check
        %p165 = pneg %p79
      $region18: #{shortcut_block_forward.1} parent=11 // pred_check_branch
        %167 = sbr.rel (%p165) target = $region20
      $region19: #{shortcut_block_forward.1} parent=11 // pred_region
        _
      $region20: #{shortcut_block_forward.1} parent=11 // pred_fallthru
        _
      // Predicated region
      $region21: #{shortcut_block_forward.1} parent=11 // pred_check
        %p168 = pneg %p100
      $region22: #{shortcut_block_forward.1} parent=11 // pred_check_branch
        %170 = sbr.rel (%p168) target = $region24
      $region23: #{shortcut_block_forward.1} parent=11 // pred_region
        _
      $region24: #{shortcut_block_forward.1} parent=11 // pred_fallthru
        _
      // Predicated region
      $region25: #{shortcut_block_forward.1} parent=11 // pred_check
        %p171 = pneg %p121
      $region26: #{shortcut_block_forward.1} parent=11 // pred_check_branch
        %173 = sbr.rel (%p171) target = $region28
      $region27: #{shortcut_block_forward.1} parent=11 // pred_region
        _
      $region28: #{shortcut_block_forward.1} parent=11 // pred_fallthru
        _
    $region12: #{shortcut_block_forward.1} parent=5 // pred_fallthru
      _
    %p174 = scmp.lt.s32.totalorder %s11, 2
    // Predicated region
    $region29: #{shortcut_block_forward.1} parent=5 // pred_check
      %p175 = pneg %p174
    $region30: #{shortcut_block_forward.1} parent=5 // pred_check_branch
      %177 = sbr.rel (%p175) target = $region32
    $region31: #{shortcut_block_forward.1} parent=5 // pred_region
      // Predicated region
      $region33: #{shortcut_block_forward.1} parent=31 // pred_check
        %p178 = pneg %p31
      $region34: #{shortcut_block_forward.1} parent=31 // pred_check_branch
        %180 = sbr.rel (%p178) target = $region36
      $region35: #{shortcut_block_forward.1} parent=31 // pred_region
        %s181 = smul.u32 2, %s11
        %p182 = scmp.lt.s32.totalorder %s181, 3
        %s183 = scalar_select %p182, %s181, 3
        %s184 = smul.addr %s183, 2
        %s185 = smul.addr %s184, 8
        %s186 = scalar_lea.vmem %s0, %s185
        %s187 = smul.u32 2, %s11
      $region36: #{shortcut_block_forward.1} parent=31 // pred_fallthru
        _
    $region32: #{shortcut_block_forward.1} parent=5 // pred_fallthru
      _
    %p188 = scmp.le.s32.totalorder 1, %s11
    %p189 = scmp.lt.s32.totalorder %s11, 3
    %p190 = pnand %p188, %p189
    %p191 = pneg %p190
    // Predicated region
    $region37: #{shortcut_block_forward.1} parent=5 // pred_check
      _
    $region38: #{shortcut_block_forward.1} parent=5 // pred_check_branch
      %193 = sbr.rel (%p190) target = $region40
    $region39: #{shortcut_block_forward.1} parent=5 // pred_region
      %s194 = ssub.s32 %s11, 1
      %s195 = smul.u32 2, %s16
      %p196 = scmp.lt.s32.totalorder %s195, 3
      %s197 = scalar_select %p196, %s195, 3
      %s198 = smul.addr %s197, 2
      %s199 = smul.addr %s198, 8
      %s200 = scalar_lea.vmem %s0, %s199
      %p201 = pneg %p37
      %p202 = pneg %p34
      %p203 = pneg %p58
      %p204 = pneg %p55
      %p205 = pneg %p79
      %p206 = pneg %p76
      %p207 = pneg %p100
      %p208 = pneg %p97
      %p209 = pneg %p121
      %p210 = pneg %p118
      %p211 = pneg %p147
      %p212 = pneg %p144
      %s213 = smul.u32 2, %s16
      %p214 = scmp.lt.s32.totalorder %s213, 3
      %s215 = scalar_select %p214, %s213, 3
      %s216 = smul.addr %s215, 2
      %s217 = smul.addr %s216, 8
      %s218 = scalar_lea.vmem %s5, %s217
      %s219 = smul.u32 2, %s16
      %p220 = scmp.lt.s32.totalorder %s219, 3
      %s221 = scalar_select %p220, %s219, 3
      %s222 = smul.addr %s221, 2
      %s223 = smul.addr %s222, 8
      %s224 = scalar_lea.vmem %s0, %s223
      %s225 = smul.u32 2, %s16
      %s226 = smul.u32 2, %s16
      %p227 = scmp.lt.s32.totalorder %s226, 3
      %s228 = scalar_select %p227, %s226, 3
      %s229 = smul.addr %s228, 2
      %s230 = smul.addr %s229, 8
      %s231 = scalar_lea.vmem %s5, %s230
      %s232 = smul.u32 2, %s16
      %vm234 = vcmask 516096
      %vm235 = vsmask.f32 256
      %vm236 = vmand %vm234, %vm235
      %v237 = vld [vmem:[#allocation2] sm:$0x1]
      %v238 = vsel %vm236, 0, %v237
      %239 = vst [vmem:[#allocation2] sm:$0x1] %v238
      %vm240 = vcmask 1040384
      %vm241 = vmand %vm240, %vm235
      %v242 = vld [vmem:[#allocation3] sm:$0x1]
      %v243 = vsel %vm241, 0, %v242
      %244 = vst [vmem:[#allocation3] sm:$0x1] %v243
      %vm245 = vsmask.f32 7938
      %vm246 = vmand %vm234, %vm245
      %v247 = vld [vmem:[#allocation2 + $0x8] sm:$0x1]
      %v248 = vsel %vm246, 0, %v247
      %249 = vst [vmem:[#allocation2 + $0x8] sm:$0x1] %v248
      %vm250 = vmand %vm240, %vm245
      %v251 = vld [vmem:[#allocation3 + $0x8] sm:$0x1]
      %v252 = vsel %vm250, 0, %v251
      %253 = vst [vmem:[#allocation3 + $0x8] sm:$0x1] %v252
      %vm254 = vcmask 517121
      %255 = vst.msk [vmem:[#allocation2 + $0x10] sm:$0x2] %vm254, 0
      %256 = vst [vmem:[#allocation3 + $0x10] sm:$0x2] 0
      %v257 = vld [vmem:[%s224] sm:$0xff]
      %v258 = vld [vmem:[%s224 + $0x8] sm:$0xff]
      %v259 = vpack.c.bf16 %v257, %v257
      %v260 = vpack.c.bf16 %v258, %v258
      %vm261 = vsmask.f32 4368
      %vm262 = vmor %vm235, %vm261
      %v264 = vshrl.u32 %v259, 16
      %v266 = vrot.slane %v264, 7
      %v267 = vshll.u32 %v259, 16
      %v269 = vor.u32 %v266, %v267
      %v270 = vrot.slane %v266, 4
      %v272 = vshrl.u32 %v260, 16
      %v274 = vrot.slane %v272, 7
      %v275 = vshll.u32 %v260, 16
      %v277 = vor.u32 %v274, %v275
      %v278 = vsel %vm262, %v270, %v277
      %v279 = vrot.slane %v274, 4
      %vm283 = vcmask 519168
      %vm284 = vmand %vm283, %vm245
      %v285 = vld [vmem:[#allocation2] sm:$0xf]
      %v286 = vsel %vm284, %v269, %v285
      %287 = vst [vmem:[#allocation2] sm:$0xf] %v286
      %vm288 = vcmask 519168
      %289 = vst.msk [vmem:[#allocation2 + $0x4] sm:$0xf] %vm288, %v278
      %v290 = vld [vmem:[#allocation2 + $0x8] sm:$0x1]
      %v291 = vsel %vm236, %v279, %v290
      %292 = vst [vmem:[#allocation2 + $0x8] sm:$0x1] %v291
      %s293 = scalar_lea.vmem %s224, 16
      %v294 = vld [vmem:[%s293] sm:$0xff]
      %v295 = vld [vmem:[%s293 + $0x8] sm:$0xff]
      %v296 = vpack.c.bf16 %v294, %v294
      %v297 = vpack.c.bf16 %v295, %v295
      %vm300 = vcmask 1044484
      %vm301 = vmor %vm240, %vm300
      %v302 = vrot.slane %v296, 7
      %v303 = vrot.slane %v302, 4
      %v304 = vrot.slane %v297, 7
      %v305 = vsel %vm301, %v303, %v304
      %v306 = vrot.slane %v304, 4
      %vm310 = vcmask 519169
      %311 = vst.msk [vmem:[#allocation2 + $0x8] sm:$0xe] %vm310, %v302
      %312 = vst.msk [vmem:[#allocation2 + $0xc] sm:$0xf] %vm288, %v305
      %vm313 = vcmask 516096
      %314 = vst.msk [vmem:[#allocation2 + $0x10] sm:$0x1] %vm313, %v306
      %v315 = vld [vmem:[#allocation2] sm:$0xf]
      %v316 = vld [vmem:[#allocation2 + $0x4] sm:$0xf]
      %v317 = vld [vmem:[#allocation2 + $0x8] sm:$0xf]
      %v318 = vld [vmem:[#allocation2 + $0xc] sm:$0xf]
      %v319 = vld [vmem:[#allocation2 + $0x10] sm:$0x1]
      %v320 = vld [vmem:[%s1] sm:$0xf]
      %v321 = vld [vmem:[%s1 + $0x4] sm:$0xf]
      %v322 = vld [vmem:[%s1 + $0x8] sm:$0xf]
      %v323 = vld [vmem:[%s1 + $0xc] sm:$0xf]
      %v324 = vld [vmem:[%s1 + $0x10] sm:$0xf]
      %v325 = vld [vmem:[%s1 + $0x14] sm:$0xf]
      %v326 = vld [vmem:[%s1 + $0x18] sm:$0xf]
      %v327 = vld [vmem:[%s1 + $0x1c] sm:$0xf]
      %v328 = vld [vmem:[#allocation2 + $0x10] sm:$0x3]
      %s329 = scalar_lea.vmem %s1, 32
      %v330 = vld [vmem:[%s329] sm:$0xf]
      %v331 = vld [vmem:[%s329 + $0x4] sm:$0xf]
      %v332 = vld [vmem:[%s329 + $0x8] sm:$0xf]
      %v333 = vld [vmem:[%s329 + $0xc] sm:$0xf]
      %v334 = vld [vmem:[%s329 + $0x10] sm:$0xf]
      %v335 = vld [vmem:[%s329 + $0x14] sm:$0xf]
      %v336 = vld [vmem:[%s329 + $0x18] sm:$0xf]
      %v337 = vld [vmem:[%s329 + $0x1c] sm:$0xf]
      %v343 = vunpack.c.l.b16 %v315
      %v344 = vunpack.c.l.b16 %v316
      %v345 = vunpack.c.l.b16 %v317
      %v346 = vunpack.c.l.b16 %v318
      %v347 = vunpack.c.l.b16 %v328
      %v348 = vpack.c.b16 %v344, %v343
      %v349 = vpack.c.b16 %v346, %v345
      %v350 = vpack.c.b16 %v347, %v347
      %vm351 = vsmask.f32 7424
      %v353 = vshrl.u32 %v348, 16
      %v355 = vshll.u32 %v348, 16
      %v357 = vrot.slane %v355, 1
      %v358 = vor.u32 %v353, %v357
      %v360 = vshll.u32 %v349, 16
      %v362 = vrot.slane %v360, 1
      %v363 = vsel %vm351, %v358, %v362
      %v364 = vshrl.u32 %v349, 16
      %v366 = vor.u32 %v364, %v362
      %v368 = vshll.u32 %v350, 16
      %v370 = vrot.slane %v368, 1
      %v371 = vsel %vm351, %v366, %v370
      %v372 = vshrl.u32 %v350, 16
      %v374 = vor.u32 %v372, %v370
      %v383 = vunpack.c.l.b16 %v330
      %v384 = vunpack.c.l.b16 %v331
      %v385 = vunpack.c.l.b16 %v332
      %v386 = vunpack.c.l.b16 %v333
      %v387 = vunpack.c.l.b16 %v334
      %v388 = vunpack.c.l.b16 %v335
      %v389 = vunpack.c.l.b16 %v336
      %v390 = vunpack.c.l.b16 %v337
      %v391 = vpack.c.b16 %v384, %v383
      %v392 = vpack.c.b16 %v386, %v385
      %v393 = vpack.c.b16 %v388, %v387
      %v394 = vpack.c.b16 %v390, %v389
      %vm399 = vcmask 523264
      %v401 = vsel %vm399, %v363, 0
      %v404 = vsel %vm399, %v371, 0
      %v407 = vsel %vm399, %v374, 0
      %409 = vmatpush.bf16.msra.mxu0 0
      %410 = vmatpush.bf16.msra.mxu0 0
      %411 = vmatpush.bf16.msra.mxu0 0
      %412 = vmatpush.bf16.msra.mxu0 0
      %413 = vmatpush.bf16.msra.mxu0 %v394
      %414 = vmatpush.bf16.msra.mxu0 %v393
      %415 = vmatpush.bf16.msra.mxu0 %v392
      %416 = vmatpush.bf16.msra.mxu0 %v391
      %417 = vmatmul.bf16.gmra.mxu0 %v401
      %v418 = vpop.f32.mrf.mxu0
      %v419 = vadd.f32 0.0, %v418
      %v420 = vpop.f32.mrf.mxu0
      %v421 = vadd.f32 0.0, %v420
      %422 = vmatmul.bf16.gmra.mxu0 %v404
      %v423 = vpop.f32.mrf.mxu0
      %v424 = vadd.f32 0.0, %v423
      %v425 = vpop.f32.mrf.mxu0
      %v426 = vadd.f32 0.0, %v425
      %427 = vmatmul.bf16.gmra.mxu0 %v407
      %v428 = vpop.f32.mrf.mxu0
      %v429 = vadd.f32 0.0, %v428
      %v430 = vpop.f32.mrf.mxu0
      %431 = vdwg.mxu0
      %v433 = vunpack.c.l.b16 %v319
      %v434 = vpack.c.b16 %v433, %v433
      %v443 = vunpack.c.l.b16 %v320
      %v444 = vunpack.c.l.b16 %v321
      %v445 = vunpack.c.l.b16 %v322
      %v446 = vunpack.c.l.b16 %v323
      %v447 = vunpack.c.l.b16 %v324
      %v448 = vunpack.c.l.b16 %v325
      %v449 = vunpack.c.l.b16 %v326
      %v450 = vunpack.c.l.b16 %v327
      %v451 = vpack.c.b16 %v444, %v443
      %v452 = vpack.c.b16 %v446, %v445
      %v453 = vpack.c.b16 %v448, %v447
      %v454 = vpack.c.b16 %v450, %v449
      %v459 = vsel %vm399, %v348, 0
      %v461 = vsel %vm399, %v349, 0
      %v464 = vsel %vm399, %v434, 0
      %466 = vmatpush.bf16.msra.mxu0 0
      %467 = vmatpush.bf16.msra.mxu0 0
      %468 = vmatpush.bf16.msra.mxu0 0
      %469 = vmatpush.bf16.msra.mxu0 0
      %470 = vmatpush.bf16.msra.mxu0 %v454
      %471 = vmatpush.bf16.msra.mxu0 %v453
      %472 = vmatpush.bf16.msra.mxu0 %v452
      %473 = vmatpush.bf16.msra.mxu0 %v451
      %474 = vmatmul.bf16.gmra.mxu0 %v459
      %v475 = vpop.f32.mrf.mxu0
      %v476 = vadd.f32 %v419, %v475
      %v477 = vpop.f32.mrf.mxu0
      %v478 = vadd.f32 %v421, %v477
      %479 = vmatmul.bf16.gmra.mxu0 %v461
      %v480 = vpop.f32.mrf.mxu0
      %v481 = vadd.f32 %v424, %v480
      %v482 = vpop.f32.mrf.mxu0
      %v483 = vadd.f32 %v426, %v482
      %484 = vmatmul.bf16.gmra.mxu0 %v464
      %v485 = vpop.f32.mrf.mxu0
      %v486 = vadd.f32 %v429, %v485
      %v487 = vpop.f32.mrf.mxu0
      %488 = vdwg.mxu0
      %v489 = vld [vmem:[#allocation2] sm:$0xe]
      %s490 = scalar_lea.vmem %s1, 64
      %v491 = vld [vmem:[%s490] sm:$0xf]
      %v492 = vld [vmem:[%s490 + $0x4] sm:$0xf]
      %v493 = vld [vmem:[%s490 + $0x8] sm:$0xf]
      %v494 = vld [vmem:[%s490 + $0xc] sm:$0xf]
      %v495 = vld [vmem:[%s490 + $0x10] sm:$0xf]
      %v496 = vld [vmem:[%s490 + $0x14] sm:$0xf]
      %v497 = vld [vmem:[%s490 + $0x18] sm:$0xf]
      %v498 = vld [vmem:[%s490 + $0x1c] sm:$0xf]
      %v500 = vunpack.c.l.b16 %v489
      %v501 = vpack.c.b16 %v344, %v500
      %vm502 = vcmask 1046528
      %v503 = vrot.slane %v501, 1
      %v504 = vrot.slane %v349, 1
      %v505 = vsel %vm502, %v503, %v504
      %v506 = vrot.slane %v350, 1
      %v507 = vsel %vm502, %v504, %v506
      %v516 = vunpack.c.l.b16 %v491
      %v517 = vunpack.c.l.b16 %v492
      %v518 = vunpack.c.l.b16 %v493
      %v519 = vunpack.c.l.b16 %v494
      %v520 = vunpack.c.l.b16 %v495
      %v521 = vunpack.c.l.b16 %v496
      %v522 = vunpack.c.l.b16 %v497
      %v523 = vunpack.c.l.b16 %v498
      %v524 = vpack.c.b16 %v517, %v516
      %v525 = vpack.c.b16 %v519, %v518
      %v526 = vpack.c.b16 %v521, %v520
      %v527 = vpack.c.b16 %v523, %v522
      %v533 = vsel %vm399, %v505, 0
      %v536 = vsel %vm399, %v507, 0
      %v539 = vsel %vm399, %v506, 0
      %541 = vmatpush.bf16.msra.mxu0 0
      %542 = vmatpush.bf16.msra.mxu0 0
      %543 = vmatpush.bf16.msra.mxu0 0
      %544 = vmatpush.bf16.msra.mxu0 0
      %545 = vmatpush.bf16.msra.mxu0 %v527
      %546 = vmatpush.bf16.msra.mxu0 %v526
      %547 = vmatpush.bf16.msra.mxu0 %v525
      %548 = vmatpush.bf16.msra.mxu0 %v524
      %549 = vmatmul.bf16.gmra.mxu0 %v533
      %v550 = vpop.f32.mrf.mxu0
      %v551 = vadd.f32 0.0, %v550
      %v552 = vpop.f32.mrf.mxu0
      %v553 = vadd.f32 0.0, %v552
      %554 = vmatmul.bf16.gmra.mxu0 %v536
      %v555 = vpop.f32.mrf.mxu0
      %v556 = vadd.f32 0.0, %v555
      %v557 = vpop.f32.mrf.mxu0
      %v558 = vadd.f32 0.0, %v557
      %559 = vmatmul.bf16.gmra.mxu0 %v539
      %v560 = vpop.f32.mrf.mxu0
      %v561 = vadd.f32 0.0, %v560
      %v562 = vpop.f32.mrf.mxu0
      %563 = vdwg.mxu0
      %v564 = vadd.f32 %v476, %v551
      %v565 = vadd.f32 %v478, %v553
      %v566 = vadd.f32 %v481, %v556
      %v567 = vadd.f32 %v483, %v558
      %v568 = vadd.f32 %v486, %v561
      %v569 = vld [vmem:[%s2] sm:$0x1]
      %v571 = vperm.slane %v569, 0
      %v573 = vadd.f32 %v564, %v571
      %v574 = vadd.f32 %v565, %v571
      %v575 = vadd.f32 %v566, %v571
      %v576 = vadd.f32 %v567, %v571
      %v577 = vadd.f32 %v568, %v571
      %v578 = vmax.f32 %v573, 0.0
      %v579 = vmax.f32 %v574, 0.0
      %v580 = vmax.f32 %v575, 0.0
      %v581 = vmax.f32 %v576, 0.0
      %v582 = vmax.f32 %v577, 0.0
      %v583 = vpack.c.bf16 %v578, %v578
      %v584 = vpack.c.bf16 %v579, %v579
      %v586 = vshrl.u32 %v583, 16
      %v588 = vrot.slane %v586, 7
      %v589 = vshll.u32 %v583, 16
      %v591 = vor.u32 %v588, %v589
      %v592 = vrot.slane %v588, 4
      %v594 = vshrl.u32 %v584, 16
      %v596 = vrot.slane %v594, 7
      %v597 = vshll.u32 %v584, 16
      %v599 = vor.u32 %v596, %v597
      %v600 = vsel %vm262, %v592, %v599
      %v601 = vrot.slane %v596, 4
      %vm605 = vcmask 1043456
      %vm606 = vmand %vm605, %vm245
      %v607 = vld [vmem:[#allocation3] sm:$0xf]
      %v608 = vsel %vm606, %v591, %v607
      %609 = vst [vmem:[#allocation3] sm:$0xf] %v608
      %610 = vst [vmem:[#allocation3 + $0x4] sm:$0xf] %v600
      %v611 = vld [vmem:[#allocation3 + $0x8] sm:$0x1]
      %v612 = vsel %vm241, %v601, %v611
      %613 = vst [vmem:[#allocation3 + $0x8] sm:$0x1] %v612
      %v614 = vpack.c.bf16 %v580, %v580
      %v615 = vpack.c.bf16 %v581, %v581
      %v616 = vpack.c.bf16 %v582, %v582
      %v618 = vshrl.u32 %v614, 16
      %v620 = vrot.slane %v618, 7
      %v621 = vshll.u32 %v614, 16
      %v623 = vor.u32 %v620, %v621
      %v624 = vrot.slane %v620, 4
      %v626 = vshrl.u32 %v615, 16
      %v628 = vrot.slane %v626, 7
      %v629 = vshll.u32 %v615, 16
      %v631 = vor.u32 %v628, %v629
      %v632 = vsel %vm262, %v624, %v631
      %v633 = vrot.slane %v628, 4
      %v635 = vshll.u32 %v616, 16
      %v637 = vsel %vm262, %v633, %v635
      %641 = vst [vmem:[#allocation3 + $0x8] sm:$0xe] %v623
      %642 = vst [vmem:[#allocation3 + $0xc] sm:$0xf] %v632
      %643 = vst [vmem:[#allocation3 + $0x10] sm:$0x1] %v637
      %v644 = vld [vmem:[#allocation3] sm:$0xf]
      %v645 = vld [vmem:[#allocation3 + $0x4] sm:$0xf]
      %v646 = vld [vmem:[#allocation3 + $0x8] sm:$0xf]
      %v647 = vld [vmem:[#allocation3 + $0xc] sm:$0xf]
      %v648 = vld [vmem:[#allocation3 + $0x10] sm:$0x1]
      %v649 = vld [vmem:[%s3] sm:$0xf]
      %v650 = vld [vmem:[%s3 + $0x4] sm:$0xf]
      %v651 = vld [vmem:[%s3 + $0x8] sm:$0xf]
      %v652 = vld [vmem:[%s3 + $0xc] sm:$0xf]
      %v653 = vld [vmem:[%s3 + $0x10] sm:$0xf]
      %v654 = vld [vmem:[%s3 + $0x14] sm:$0xf]
      %v655 = vld [vmem:[%s3 + $0x18] sm:$0xf]
      %v656 = vld [vmem:[%s3 + $0x1c] sm:$0xf]
      %v657 = vld [vmem:[%s3 + $0x20] sm:$0xf]
      %v658 = vld [vmem:[%s3 + $0x24] sm:$0xf]
      %v659 = vld [vmem:[%s3 + $0x28] sm:$0xf]
      %v660 = vld [vmem:[%s3 + $0x2c] sm:$0xf]
      %v661 = vld [vmem:[%s3 + $0x30] sm:$0xf]
      %v662 = vld [vmem:[%s3 + $0x34] sm:$0xf]
      %v663 = vld [vmem:[%s3 + $0x38] sm:$0xf]
      %v664 = vld [vmem:[%s3 + $0x3c] sm:$0xf]
      %v665 = vld [vmem:[#allocation3 + $0x10] sm:$0x3]
      %s666 = scalar_lea.vmem %s3, 64
      %v667 = vld [vmem:[%s666] sm:$0xf]
      %v668 = vld [vmem:[%s666 + $0x4] sm:$0xf]
      %v669 = vld [vmem:[%s666 + $0x8] sm:$0xf]
      %v670 = vld [vmem:[%s666 + $0xc] sm:$0xf]
      %v671 = vld [vmem:[%s666 + $0x10] sm:$0xf]
      %v672 = vld [vmem:[%s666 + $0x14] sm:$0xf]
      %v673 = vld [vmem:[%s666 + $0x18] sm:$0xf]
      %v674 = vld [vmem:[%s666 + $0x1c] sm:$0xf]
      %v675 = vld [vmem:[%s666 + $0x20] sm:$0xf]
      %v676 = vld [vmem:[%s666 + $0x24] sm:$0xf]
      %v677 = vld [vmem:[%s666 + $0x28] sm:$0xf]
      %v678 = vld [vmem:[%s666 + $0x2c] sm:$0xf]
      %v679 = vld [vmem:[%s666 + $0x30] sm:$0xf]
      %v680 = vld [vmem:[%s666 + $0x34] sm:$0xf]
      %v681 = vld [vmem:[%s666 + $0x38] sm:$0xf]
      %v682 = vld [vmem:[%s666 + $0x3c] sm:$0xf]
      %v688 = vunpack.c.l.b16 %v644
      %v689 = vunpack.c.l.b16 %v645
      %v690 = vunpack.c.l.b16 %v646
      %v691 = vunpack.c.l.b16 %v647
      %v692 = vunpack.c.l.b16 %v665
      %v693 = vpack.c.b16 %v689, %v688
      %v694 = vpack.c.b16 %v691, %v690
      %v695 = vpack.c.b16 %v692, %v692
      %v697 = vshrl.u32 %v693, 16
      %v699 = vshll.u32 %v693, 16
      %v701 = vrot.slane %v699, 1
      %v702 = vor.u32 %v697, %v701
      %v704 = vshll.u32 %v694, 16
      %v706 = vrot.slane %v704, 1
      %v707 = vsel %vm351, %v702, %v706
      %v708 = vshrl.u32 %v694, 16
      %v710 = vor.u32 %v708, %v706
      %v712 = vshll.u32 %v695, 16
      %v714 = vrot.slane %v712, 1
      %v715 = vsel %vm351, %v710, %v714
      %v716 = vshrl.u32 %v695, 16
      %v718 = vor.u32 %v716, %v714
      %v738 = vunpack.c.l.b16 %v667
      %v739 = vunpack.c.l.b16 %v668
      %v740 = vunpack.c.l.b16 %v669
      %v741 = vunpack.c.l.b16 %v670
      %v742 = vunpack.c.l.b16 %v671
      %v743 = vunpack.c.l.b16 %v672
      %v744 = vunpack.c.l.b16 %v673
      %v745 = vunpack.c.l.b16 %v674
      %v746 = vunpack.c.l.b16 %v675
      %v747 = vunpack.c.l.b16 %v676
      %v748 = vunpack.c.l.b16 %v677
      %v749 = vunpack.c.l.b16 %v678
      %v750 = vunpack.c.l.b16 %v679
      %v751 = vunpack.c.l.b16 %v680
      %v752 = vunpack.c.l.b16 %v681
      %v753 = vunpack.c.l.b16 %v682
      %v754 = vpack.c.b16 %v739, %v738
      %v755 = vpack.c.b16 %v741, %v740
      %v756 = vpack.c.b16 %v743, %v742
      %v757 = vpack.c.b16 %v745, %v744
      %v758 = vpack.c.b16 %v747, %v746
      %v759 = vpack.c.b16 %v749, %v748
      %v760 = vpack.c.b16 %v751, %v750
      %v761 = vpack.c.b16 %v753, %v752
      %770 = vmatpush.bf16.msra.mxu0 %v761
      %771 = vmatpush.bf16.msra.mxu0 %v760
      %772 = vmatpush.bf16.msra.mxu0 %v759
      %773 = vmatpush.bf16.msra.mxu0 %v758
      %774 = vmatpush.bf16.msra.mxu0 %v757
      %775 = vmatpush.bf16.msra.mxu0 %v756
      %776 = vmatpush.bf16.msra.mxu0 %v755
      %777 = vmatpush.bf16.msra.mxu0 %v754
      %778 = vmatmul.bf16.gmra.mxu0 %v707
      %v779 = vpop.f32.mrf.mxu0
      %v780 = vadd.f32 0.0, %v779
      %v781 = vpop.f32.mrf.mxu0
      %v782 = vadd.f32 0.0, %v781
      %783 = vmatmul.bf16.gmra.mxu0 %v715
      %v784 = vpop.f32.mrf.mxu0
      %v785 = vadd.f32 0.0, %v784
      %v786 = vpop.f32.mrf.mxu0
      %v787 = vadd.f32 0.0, %v786
      %788 = vmatmul.bf16.gmra.mxu0 %v718
      %v789 = vpop.f32.mrf.mxu0
      %v790 = vadd.f32 0.0, %v789
      %v791 = vpop.f32.mrf.mxu0
      %792 = vdwg.mxu0
      %v794 = vunpack.c.l.b16 %v648
      %v795 = vpack.c.b16 %v794, %v794
      %v815 = vunpack.c.l.b16 %v649
      %v816 = vunpack.c.l.b16 %v650
      %v817 = vunpack.c.l.b16 %v651
      %v818 = vunpack.c.l.b16 %v652
      %v819 = vunpack.c.l.b16 %v653
      %v820 = vunpack.c.l.b16 %v654
      %v821 = vunpack.c.l.b16 %v655
      %v822 = vunpack.c.l.b16 %v656
      %v823 = vunpack.c.l.b16 %v657
      %v824 = vunpack.c.l.b16 %v658
      %v825 = vunpack.c.l.b16 %v659
      %v826 = vunpack.c.l.b16 %v660
      %v827 = vunpack.c.l.b16 %v661
      %v828 = vunpack.c.l.b16 %v662
      %v829 = vunpack.c.l.b16 %v663
      %v830 = vunpack.c.l.b16 %v664
      %v831 = vpack.c.b16 %v816, %v815
      %v832 = vpack.c.b16 %v818, %v817
      %v833 = vpack.c.b16 %v820, %v819
      %v834 = vpack.c.b16 %v822, %v821
      %v835 = vpack.c.b16 %v824, %v823
      %v836 = vpack.c.b16 %v826, %v825
      %v837 = vpack.c.b16 %v828, %v827
      %v838 = vpack.c.b16 %v830, %v829
      %847 = vmatpush.bf16.msra.mxu0 %v838
      %848 = vmatpush.bf16.msra.mxu0 %v837
      %849 = vmatpush.bf16.msra.mxu0 %v836
      %850 = vmatpush.bf16.msra.mxu0 %v835
      %851 = vmatpush.bf16.msra.mxu0 %v834
      %852 = vmatpush.bf16.msra.mxu0 %v833
      %853 = vmatpush.bf16.msra.mxu0 %v832
      %854 = vmatpush.bf16.msra.mxu0 %v831
      %855 = vmatmul.bf16.gmra.mxu0 %v693
      %v856 = vpop.f32.mrf.mxu0
      %v857 = vadd.f32 %v780, %v856
      %v858 = vpop.f32.mrf.mxu0
      %v859 = vadd.f32 %v782, %v858
      %860 = vmatmul.bf16.gmra.mxu0 %v694
      %v861 = vpop.f32.mrf.mxu0
      %v862 = vadd.f32 %v785, %v861
      %v863 = vpop.f32.mrf.mxu0
      %v864 = vadd.f32 %v787, %v863
      %865 = vmatmul.bf16.gmra.mxu0 %v795
      %v866 = vpop.f32.mrf.mxu0
      %v867 = vadd.f32 %v790, %v866
      %v868 = vpop.f32.mrf.mxu0
      %869 = vdwg.mxu0
      %v870 = vld [vmem:[#allocation3] sm:$0xe]
      %s871 = scalar_lea.vmem %s3, 128
      %v872 = vld [vmem:[%s871] sm:$0xf]
      %v873 = vld [vmem:[%s871 + $0x4] sm:$0xf]
      %v874 = vld [vmem:[%s871 + $0x8] sm:$0xf]
      %v875 = vld [vmem:[%s871 + $0xc] sm:$0xf]
      %v876 = vld [vmem:[%s871 + $0x10] sm:$0xf]
      %v877 = vld [vmem:[%s871 + $0x14] sm:$0xf]
      %v878 = vld [vmem:[%s871 + $0x18] sm:$0xf]
      %v879 = vld [vmem:[%s871 + $0x1c] sm:$0xf]
      %v880 = vld [vmem:[%s871 + $0x20] sm:$0xf]
      %v881 = vld [vmem:[%s871 + $0x24] sm:$0xf]
      %v882 = vld [vmem:[%s871 + $0x28] sm:$0xf]
      %v883 = vld [vmem:[%s871 + $0x2c] sm:$0xf]
      %v884 = vld [vmem:[%s871 + $0x30] sm:$0xf]
      %v885 = vld [vmem:[%s871 + $0x34] sm:$0xf]
      %v886 = vld [vmem:[%s871 + $0x38] sm:$0xf]
      %v887 = vld [vmem:[%s871 + $0x3c] sm:$0xf]
      %v889 = vunpack.c.l.b16 %v870
      %v890 = vpack.c.b16 %v689, %v889
      %v891 = vrot.slane %v890, 1
      %v892 = vrot.slane %v694, 1
      %v893 = vsel %vm502, %v891, %v892
      %v894 = vrot.slane %v695, 1
      %v895 = vsel %vm502, %v892, %v894
      %v915 = vunpack.c.l.b16 %v872
      %v916 = vunpack.c.l.b16 %v873
      %v917 = vunpack.c.l.b16 %v874
      %v918 = vunpack.c.l.b16 %v875
      %v919 = vunpack.c.l.b16 %v876
      %v920 = vunpack.c.l.b16 %v877
      %v921 = vunpack.c.l.b16 %v878
      %v922 = vunpack.c.l.b16 %v879
      %v923 = vunpack.c.l.b16 %v880
      %v924 = vunpack.c.l.b16 %v881
      %v925 = vunpack.c.l.b16 %v882
      %v926 = vunpack.c.l.b16 %v883
      %v927 = vunpack.c.l.b16 %v884
      %v928 = vunpack.c.l.b16 %v885
      %v929 = vunpack.c.l.b16 %v886
      %v930 = vunpack.c.l.b16 %v887
      %v931 = vpack.c.b16 %v916, %v915
      %v932 = vpack.c.b16 %v918, %v917
      %v933 = vpack.c.b16 %v920, %v919
      %v934 = vpack.c.b16 %v922, %v921
      %v935 = vpack.c.b16 %v924, %v923
      %v936 = vpack.c.b16 %v926, %v925
      %v937 = vpack.c.b16 %v928, %v927
      %v938 = vpack.c.b16 %v930, %v929
      %947 = vmatpush.bf16.msra.mxu0 %v938
      %948 = vmatpush.bf16.msra.mxu0 %v937
      %949 = vmatpush.bf16.msra.mxu0 %v936
      %950 = vmatpush.bf16.msra.mxu0 %v935
      %951 = vmatpush.bf16.msra.mxu0 %v934
      %952 = vmatpush.bf16.msra.mxu0 %v933
      %953 = vmatpush.bf16.msra.mxu0 %v932
      %954 = vmatpush.bf16.msra.mxu0 %v931
      %955 = vmatmul.bf16.gmra.mxu0 %v893
      %v956 = vpop.f32.mrf.mxu0
      %v957 = vadd.f32 0.0, %v956
      %v958 = vpop.f32.mrf.mxu0
      %v959 = vadd.f32 0.0, %v958
      %960 = vmatmul.bf16.gmra.mxu0 %v895
      %v961 = vpop.f32.mrf.mxu0
      %v962 = vadd.f32 0.0, %v961
      %v963 = vpop.f32.mrf.mxu0
      %v964 = vadd.f32 0.0, %v963
      %965 = vmatmul.bf16.gmra.mxu0 %v894
      %v966 = vpop.f32.mrf.mxu0
      %v967 = vadd.f32 0.0, %v966
      %v968 = vpop.f32.mrf.mxu0
      %969 = vdwg.mxu0
      %v970 = vadd.f32 %v857, %v957
      %v971 = vadd.f32 %v859, %v959
      %v972 = vadd.f32 %v862, %v962
      %v973 = vadd.f32 %v864, %v964
      %v974 = vadd.f32 %v867, %v967
      %v975 = vld [vmem:[%s224] sm:$0xff]
      %v976 = vld [vmem:[%s224 + $0x8] sm:$0xff]
      %v977 = vadd.f32 %v975, %v970
      %v978 = vadd.f32 %v976, %v971
      %v979 = vld [vmem:[%s4] sm:$0x1]
      %v981 = vperm.slane %v979, 0
      %v983 = vadd.f32 %v977, %v981
      %v984 = vadd.f32 %v978, %v981
      %985 = vst.msk [vmem:[%s231] sm:$0xff] %vm399, %v983
      %986 = vst.msk [vmem:[%s231 + $0x8] sm:$0xff] %vm399, %v984
      %v987 = vld [vmem:[%s293] sm:$0xff]
      %v988 = vld [vmem:[%s293 + $0x8] sm:$0xff]
      %vm992 = vcmask 1046528
      %v993 = vrot.slane %v972, 1
      %v994 = vrot.slane %v973, 1
      %v995 = vsel %vm992, %v993, %v994
      %v996 = vrot.slane %v974, 1
      %v997 = vsel %vm992, %v994, %v996
      %v1000 = vadd.f32 %v987, %v995
      %v1001 = vadd.f32 %v988, %v997
      %v1002 = vld [vmem:[%s4] sm:$0x1]
      %v1004 = vperm.slane %v1002, 0
      %v1006 = vadd.f32 %v1000, %v1004
      %v1007 = vadd.f32 %v1001, %v1004
      %s1008 = scalar_lea.vmem %s231, 16
      %1009 = vst.msk [vmem:[%s1008] sm:$0xff] %vm399, %v1006
      %1010 = vst.msk [vmem:[%s1008 + $0x8] sm:$0xff] %vm399, %v1007
      %s1011 = smul.u32 2, %s16
      %p1012 = scmp.lt.s32.totalorder %s1011, 3
      %s1013 = scalar_select %p1012, %s1011, 3
      %s1014 = smul.addr %s1013, 2
      %s1015 = smul.addr %s1014, 8
      %s1016 = scalar_lea.vmem %s5, %s1015
      // Predicated region
      $region41: #{shortcut_block_forward.1} parent=39 // pred_check
        %p1017 = pneg %p144
      $region42: #{shortcut_block_forward.1} parent=39 // pred_check_branch
        %1019 = sbr.rel (%p1017) target = $region44
      $region43: #{shortcut_block_forward.1} parent=39 // pred_region
        %s1020 = smul.u32 2, %s16
      $region44: #{shortcut_block_forward.1} parent=39 // pred_fallthru
        _
    $region40: #{shortcut_block_forward.1} parent=5 // pred_fallthru
      _
    %p1021 = scmp.le.s32.totalorder 2, %s11
    // Predicated region
    $region45: #{shortcut_block_forward.1} parent=5 // pred_check
      %p1022 = pneg %p1021
    $region46: #{shortcut_block_forward.1} parent=5 // pred_check_branch
      %1024 = sbr.rel (%p1022) target = $region48
    $region47: #{shortcut_block_forward.1} parent=5 // pred_region
      %s1025 = ssub.s32 %s11, 2
      // Predicated region
      $region49: #{shortcut_block_forward.1} parent=47 // pred_check
        %p1026 = pneg %p150
      $region50: #{shortcut_block_forward.1} parent=47 // pred_check_branch
        %1028 = sbr.rel (%p1026) target = $region52
      $region51: #{shortcut_block_forward.1} parent=47 // pred_region
        %s1029 = smul.u32 2, %s17
        %p1030 = scmp.lt.s32.totalorder %s1029, 3
        %s1031 = scalar_select %p1030, %s1029, 3
        %s1032 = smul.addr %s1031, 2
        %s1033 = smul.addr %s1032, 8
        %s1034 = scalar_lea.vmem %s5, %s1033
      $region52: #{shortcut_block_forward.1} parent=47 // pred_fallthru
        _
    $region48: #{shortcut_block_forward.1} parent=5 // pred_fallthru
      _
  $region6: #{shortcut_block_forward.1} parent=0 // loop_footer
    %s15 = sadd.s32 1, %s11
  $region7: #{shortcut_block_forward.1} parent=0 // loop_footer_branch
    %10 = sbr.rel target = $region3
  $region8: #{shortcut_block_forward.1} parent=0 // loop_exit
    _

</llo_original>
